<compile_context>
chip_gen: v6e
topology: v6e:2x2x1
jax: 0.10.0
libtpu: 0.0.40
codegen_flags: <defaults>
</compile_context>

<pallas_src>
import math
from functools import partial

import jax
import jax.numpy as jnp
from jax.experimental import pallas as pl
from jax.experimental.pallas import tpu as pltpu


def _round_up(v: int, m: int) -> int:
    return (v + m - 1) // m * m


def _vmem_budget_bytes() -> int:
    """Generation-aware VMEM budget for the (double-buffered) data blocks."""
    try:
        phys = int(getattr(pltpu.get_tpu_info(), "vmem_capacity_bytes", 64 << 20))
    except Exception:  # conservative (v7x-safe) fallback
        phys = 64 << 20
    # ~half of physical VMEM: 64 MiB on v5e/v6e (128 MiB), 32 MiB on v7x (64 MiB).
    return max(16 << 20, min(64 << 20, phys // 2))


def _pixel_attention_kernel(x_ref, w_ref, b_ref, o_ref, *, valid_rows, mask_rows):
    """out = sigmoid(W @ x + b) * x on one lane-dense (rows, lanes) tile.

    x_ref / o_ref : (R, TS)  R rows = whole channel groups, TS spatial lanes
    w_ref         : (R, R)   (block-diagonal) 1x1-conv weight, VMEM-resident
    b_ref         : (R, 1)   f32 bias, VMEM-resident
    """
    x = x_ref[...]

    if mask_rows:
        # Ragged last row-block: zero out-of-range rows so garbage (possibly
        # NaN/Inf) cannot leak into valid rows through the dense matmul below.
        row0 = pl.program_id(0) * x.shape[0]
        rid = jax.lax.broadcasted_iota(jnp.int32, (x.shape[0], 1), 0) + row0
        x = jnp.where(rid < valid_rows, x, jnp.zeros((), x.dtype))

    # Channel mix on the MXU (otherwise ~idle), f32 accumulation.  Full
    # precision passes for f32 inputs so the 1x1 conv matches an f32 reference.
    prec = (jax.lax.Precision.HIGHEST if x.dtype == jnp.float32
            else jax.lax.Precision.DEFAULT)
    y = jax.lax.dot_general(
        w_ref[...], x, (((1,), (0,)), ((), ())),
        preferred_element_type=jnp.float32, precision=prec) + b_ref[...]

    if o_ref.dtype == jnp.bfloat16:
        # v6e/v7x have bf16 VPU/EUP: gate math in bf16 halves VALU work.
        gate = jax.nn.sigmoid(y.astype(jnp.bfloat16))
        o_ref[...] = (gate * x).astype(o_ref.dtype)
    else:
        # sigmoid(y) = 1 / (1 + exp(-y)): exp and the reciprocal both run on
        # the EUP (approx vrcp) so the divide stays off the VALU.
        gate = pl.reciprocal(1.0 + jnp.exp(-y), approx=True)
        o_ref[...] = (gate * x.astype(jnp.float32)).astype(o_ref.dtype)


def pixel_attention(x_nchw, weight, bias, *,
                    target_block_bytes: int = 2 << 20,
                    donate_input: bool = False):
    """PixelAttention forward: sigmoid(Conv2d_1x1(x)) * x, x in NCHW layout."""
    N, C, H, W = x_nchw.shape
    S = H * W
    dtype = x_nchw.dtype
    itemsize = dtype.itemsize
    sub = max(8, 32 // itemsize)            # packed sublanes: 8 f32, 16 bf16

    # Accept PyTorch Conv2d weight layout (C_out, C_in, 1, 1) or (C_out, C_in).
    w2 = jnp.asarray(weight).reshape(C, C).astype(dtype)
    b1 = jnp.asarray(bias).reshape(C).astype(jnp.float32)

    vmem_budget = _vmem_budget_bytes()
    s_lanes = _round_up(S, 128)             # padded lane extent of a full-S block

    merged = C < sub
    if merged:
        # Small C: merge (N, C) -> rows (free contiguous reshape).  The 1x1
        # conv becomes a block-diagonal matmul with kron(I_B, W), so every
        # vreg sublane carries real data and blocks are big in bytes.
        rows = N * C
        b_pack = sub // math.gcd(C, sub)    # smallest B with (B * C) % sub == 0
        unit = b_pack * C                   # row-block granule (mult of sub & C)
        row_cap = max(unit, 512 // itemsize)  # keep MXU flops/byte low (mem-bound)
        r_blk = rows if rows <= unit else unit

        resident = 2 * (row_cap * row_cap + row_cap) * itemsize
        want = min(target_block_bytes,
                   max(128 * r_blk * itemsize, (vmem_budget - resident) // 4))
        tile_s = max(128, (want // (r_blk * itemsize)) // 128 * 128)
        if tile_s >= S:
            tile_s = S
            if rows > unit:
                # One spatial block already covers all of S: grow the row block
                # toward the byte target to amortize per-grid-step overhead.
                k = max(1, min(rows // unit, row_cap // unit,
                               want // max(1, unit * s_lanes * itemsize)))
                r_blk = k * unit

        kron_b = r_blk // C
        w_in = jnp.kron(jnp.eye(kron_b, dtype=w2.dtype), w2) if kron_b > 1 else w2
        b_in = jnp.tile(b1, kron_b).reshape(r_blk, 1)
        x_in = x_nchw.reshape(rows, S)      # contiguous merge: free, no HBM pass
        lead = pl.cdiv(rows, r_blk)
        mask_rows = (rows % r_blk) != 0
        valid_rows = rows
    else:
        # C already fills the sublanes: keep the (N, C, S) view, weight (C, C).
        # TODO(synk): for very large C the resident (C, C) weight should itself
        # be tiled over the contraction; not needed for pixel-attention sizes.
        resident = 2 * (C * C + C) * itemsize
        want = min(target_block_bytes,
                   max(128 * C * itemsize, (vmem_budget - resident) // 4))
        tile_s = max(128, (want // (C * itemsize)) // 128 * 128)
        if tile_s >= S:
            tile_s = S
        w_in, b_in = w2, b1.reshape(C, 1)
        x_in = x_nchw.reshape(N, C, S)      # contiguous merge: free
        lead = N
        mask_rows = False
        valid_rows = C

    # v7x has two TensorCores: make sure the parallel grid has >= 2 steps.
    if lead * pl.cdiv(S, tile_s) == 1 and S > 128:
        tile_s = _round_up((S + 1) // 2, 128)
    grid = (lead, pl.cdiv(S, tile_s))

    if merged:
        data_spec = pl.BlockSpec((r_blk, tile_s), lambda r, s: (r, s))
        w_spec = pl.BlockSpec(w_in.shape, lambda r, s: (0, 0))     # VMEM-resident
        b_spec = pl.BlockSpec(b_in.shape, lambda r, s: (0, 0))     # VMEM-resident
    else:
        data_spec = pl.BlockSpec((None, C, tile_s), lambda n, s: (n, 0, s))
        w_spec = pl.BlockSpec(w_in.shape, lambda n, s: (0, 0))
        b_spec = pl.BlockSpec(b_in.shape, lambda n, s: (0, 0))

    out = pl.pallas_call(
        partial(_pixel_attention_kernel,
                valid_rows=valid_rows, mask_rows=mask_rows),
        out_shape=jax.ShapeDtypeStruct(x_in.shape, dtype),
        grid_spec=pltpu.PrefetchScalarGridSpec(
            num_scalar_prefetch=0,
            grid=grid,
            in_specs=[data_spec, w_spec, b_spec],
            out_specs=data_spec,
        ),
        compiler_params=pltpu.CompilerParams(
            dimension_semantics=("parallel", "parallel"),
            vmem_limit_bytes=min(vmem_budget + (16 << 20), 112 << 20)),
        # Aliasing x with the output removes a full HBM output allocation; it is
        # safe (each tile is fully read before its store) but only pays off when
        # the caller actually donates x (e.g. under jit with donate_argnums), so
        # it is opt-in.
        input_output_aliases={0: 0} if donate_input else {},
    )(x_in, w_in, b_in)

    return out.reshape(N, C, H, W)


def _reference(x_nchw, weight, bias):
    # Pure-JAX reference of the PyTorch forward (full-precision 1x1 conv).
    C = x_nchw.shape[1]
    w2 = jnp.asarray(weight).reshape(C, C)
    x1 = jnp.einsum('nchw,oc->nohw', x_nchw, w2,
                    precision=jax.lax.Precision.HIGHEST) + bias[None, :, None, None]
    return jax.nn.sigmoid(x1) * x_nchw


if __name__ == "__main__":
    key = jax.random.PRNGKey(0)
    kx, kw, kb = jax.random.split(key, 3)

    N, C, H, W = 2, 4, 16, 16              # in_channels == out_channels == 4
    x = jax.random.normal(kx, (N, C, H, W), dtype=jnp.float32)
    # PyTorch Conv2d(C, C, kernel_size=1) weight layout: (C_out, C_in, 1, 1)
    weight = jax.random.normal(kw, (C, C, 1, 1), dtype=jnp.float32) * 0.1
    bias = jax.random.normal(kb, (C,), dtype=jnp.float32) * 0.1

    out = jax.block_until_ready(pixel_attention(x, weight, bias))
    ref = _reference(x, weight, bias)

    assert out.shape == (N, C, H, W)
    # Tolerance covers the EUP approximate reciprocal used for the sigmoid.
    assert jnp.allclose(out, ref, atol=2e-3, rtol=2e-3), \
        float(jnp.max(jnp.abs(out - ref)))
    print("KERNEL_OK")
</pallas_src>

<mosaic_0001>
module attributes {stable_mosaic.version = 11 : i64} {
  func.func @_pixel_attention_kernel(%arg0: i32, %arg1: i32, %arg2: memref<8x128xf32, #tpu.memory_space<vmem>>, %arg3: memref<8x8xf32, #tpu.memory_space<vmem>>, %arg4: memref<8x1xf32, #tpu.memory_space<vmem>>, %arg5: memref<8x128xf32, #tpu.memory_space<vmem>>) attributes {dimension_semantics = [#tpu.dimension_semantics<parallel>, #tpu.dimension_semantics<parallel>], iteration_bounds = array<i64: 1, 2>, scalar_prefetch = 0 : i64, scratch_operands = 0 : i64, tpu.core_type = #tpu.core_type<tc>, window_params = [{transform_indices = @transform_0, window_bounds = array<i64: 8, 128>}, {pipeline_mode = #tpu.pipeline_mode<synchronous>, transform_indices = @transform_1, window_bounds = array<i64: 8, 8>}, {pipeline_mode = #tpu.pipeline_mode<synchronous>, transform_indices = @transform_2, window_bounds = array<i64: 8, 1>}, {transform_indices = @transform_3, window_bounds = array<i64: 8, 128>}]} {
    %c0 = arith.constant 0 : index
    %c0_0 = arith.constant 0 : index
    %0 = vector.load %arg2[%c0, %c0_0] : memref<8x128xf32, #tpu.memory_space<vmem>>, vector<8x128xf32>
    %c0_1 = arith.constant 0 : index
    %c0_2 = arith.constant 0 : index
    %1 = vector.load %arg3[%c0_1, %c0_2] : memref<8x8xf32, #tpu.memory_space<vmem>>, vector<8x8xf32>
    %cst = arith.constant dense<0.000000e+00> : vector<8x128xf32>
    %2 = tpu.matmul %1, %0, %cst {dimension_numbers = #tpu.dot_dimension_numbers<[1], [0], [0], [1], [0, 0, 1, 1], [], []>, precision = #tpu.contract_precision<fp32>} : vector<8x8xf32>, vector<8x128xf32>, vector<8x128xf32> -> vector<8x128xf32>
    %c0_3 = arith.constant 0 : index
    %c0_4 = arith.constant 0 : index
    %3 = vector.load %arg4[%c0_3, %c0_4] : memref<8x1xf32, #tpu.memory_space<vmem>>, vector<8x1xf32>
    %4 = vector.broadcast %3 : vector<8x1xf32> to vector<8x128xf32>
    %5 = arith.addf %2, %4 : vector<8x128xf32>
    %cst_5 = arith.constant 0.000000e+00 : f32
    %6 = vector.broadcast %cst_5 : f32 to vector<8x128xf32>
    %7 = arith.subf %6, %5 : vector<8x128xf32>
    %8 = math.exp %7 : vector<8x128xf32>
    %cst_6 = arith.constant 1.000000e+00 : f32
    %9 = vector.broadcast %cst_6 : f32 to vector<8x128xf32>
    %10 = arith.addf %9, %8 : vector<8x128xf32>
    %11 = tpu.reciprocal %10 {approx = true} : vector<8x128xf32> -> vector<8x128xf32>
    %12 = arith.mulf %11, %0 : vector<8x128xf32>
    %c0_7 = arith.constant 0 : index
    %c0_8 = arith.constant 0 : index
    %13 = vector.load %arg5[%c0_7, %c0_8] : memref<8x128xf32, #tpu.memory_space<vmem>>, vector<8x128xf32>
    tpu.vector_store %arg5[%c0_7, %c0_8], %12 {strides = array<i32>} : memref<8x128xf32, #tpu.memory_space<vmem>>, vector<8x128xf32>,
    return
  }
  func.func @transform_0(%arg0: i32, %arg1: i32) -> (i32, i32) {
    %c0_i32 = arith.constant 0 : i32
    return %arg0, %arg1 : i32, i32
  }
  func.func @transform_1(%arg0: i32, %arg1: i32) -> (i32, i32) {
    %c0_i32 = arith.constant 0 : i32
    %c0_i32_0 = arith.constant 0 : i32
    %c0_i32_1 = arith.constant 0 : i32
    return %c0_i32, %c0_i32_0 : i32, i32
  }
  func.func @transform_2(%arg0: i32, %arg1: i32) -> (i32, i32) {
    %c0_i32 = arith.constant 0 : i32
    %c0_i32_0 = arith.constant 0 : i32
    %c0_i32_1 = arith.constant 0 : i32
    return %c0_i32, %c0_i32_0 : i32, i32
  }
  func.func @transform_3(%arg0: i32, %arg1: i32) -> (i32, i32) {
    %c0_i32 = arith.constant 0 : i32
    return %arg0, %arg1 : i32, i32
  }
}

</mosaic_0001>

<llo_original>
// kernel: tpu_custom_call.1
$region0: #{tpu_custom_call.1}
  #allocation0 [shape = 'u32[]', space=smem, size = 0x4, offset = 0x4, fixed_abs, tag = 'smem constant byte address 0x4 - core index']
  #allocation1 [shape = 'u32[144,128]{1,0:T(1,128)}', space=vmem, size = 0x12000, scoped, tag = 'internal scratch']
  %s0 = inlined_call_operand.hbm [shape: f32[8,256], index: 0, kind: input, shape index: {}]
  %s1 = inlined_call_operand.vmem [shape: f32[8,8], index: 1, kind: input, shape index: {}]
  %s2 = inlined_call_operand.vmem [shape: f32[8,1], index: 2, kind: input, shape index: {}]
  %s3 = inlined_call_operand.hbm [shape: f32[8,256], index: 3, kind: output, shape index: {}]
  %s4 = sld [smem:[#allocation0]]
  $region49: #{tpu_custom_call.1} parent=0
    _
  %s6 = ssub.s32 1, %s4
  %s7 = scalar_select 0, %s6, %s4
  $region1: #{tpu_custom_call.1} parent=0
    #allocation2 [shape = 'u8[8192]{0}', space=vmem, size = 0x2000, scoped, tag = 'input window, operand 0']
    #allocation3 [shape = 's32[2]{0}', space=sflag, size = 0x8, scoped, tag = 'scoped memory for tpu_custom_call.1']
    #allocation4 [shape = 's32[2]{0}', space=sflag, size = 0x8, scoped, tag = 'scoped memory for tpu_custom_call.1']
    #allocation5 [shape = 'u8[8192]{0}', space=vmem, size = 0x2000, scoped, tag = 'output window, operand 0']
    %8 = vsyncpa [#allocation3], 0
    %s9 = scalar_lea.sflag [#allocation3], 1
    %10 = vsyncpa %s9, 0
    %11 = vsyncpa [#allocation4], 0
    %s12 = scalar_lea.sflag [#allocation4], 1
    %13 = vsyncpa %s12, 0
    loop: start=0, step=1, limit=4
    $region2: #{tpu_custom_call.1} parent=1 // loop_pre_header
      _
    $region3: #{tpu_custom_call.1} parent=1 // loop_header
      %s15 = sphi 0, %s19
      %p16 = scmp.ge.s32.totalorder %s15, 4
      %s22 = sphi 0, %s34
      %s23 = sphi 0, %s30
      %s24 = sphi 0, %s22
      %s25 = sphi 0, %s23
      %s26 = sphi 0, %s24
      %s27 = sphi 0, %s25
      %s39 = sphi 0, %s41
      %s42 = sphi 0, %s39
      %s43 = sphi 0, %s42
      %s59 = sphi 0, %s43
      %s63 = sphi 0, %s63
      %s65 = sphi 0, %s63
      %s66 = sphi 0, %s65
      %s80 = sphi 0, %s66
      %s84 = sphi 0, %s84
      %s86 = sphi 0, %s84
      %s87 = sphi 0, %s86
      %s101 = sphi 0, %s87
      %s109 = sphi 0, %s111
      %s112 = sphi 0, %s109
      %s113 = sphi 0, %s112
      %s129 = sphi 0, %s113
    $region4: #{tpu_custom_call.1} parent=1 // loop_header_branch
      %18 = sbr.rel (%p16) target = $region8
    $region5: #{tpu_custom_call.1} parent=1 // loop_body
      %s20 = ssub.s32 %s15, 1
      %s21 = ssub.s32 %s15, 2
      %s28 = sadd.s32 1, %s23
      %p29 = scmp.ge.s32.totalorder %s28, 2
      %s30 = scalar_select %p29, 0, %s28
      %s31 = sadd.s32 1, %s22
      %s32 = scalar_select %p29, %s31, %s22
      %p33 = scmp.ge.s32.totalorder %s32, 1
      %s34 = scalar_select %p33, 0, %s32
      %s35 = ssub.s32 %s22, %s34
      %s36 = ssub.s32 %s23, %s30
      %s37 = sor.u32 %s35, %s36
      %p38 = scmp.eq.s32.totalorder %s37, 0
      %s40 = sadd.s32 %s39, 1
      %s41 = scalar_select %p38, %s39, %s40
      %p44 = pneg %p38
      %p45 = scmp.eq.s32.totalorder %s15, 1
      %p46 = por %p44, %p45
      %p47 = scmp.ne.s32.totalorder %s39, %s42
      %p48 = scmp.eq.s32.totalorder %s15, 0
      %p49 = por %p47, %p48
      %p50 = scmp.ne.s32.totalorder %s39, %s42
      %p51 = scmp.eq.s32.totalorder %s20, 1
      %p52 = por %p50, %p51
      %p53 = scmp.ne.s32.totalorder %s42, %s43
      %p54 = scmp.eq.s32.totalorder %s20, 0
      %p55 = por %p53, %p54
      %p56 = scmp.ne.s32.totalorder %s42, %s43
      %p57 = scmp.eq.s32.totalorder %s21, 1
      %p58 = por %p56, %p57
      %p60 = scmp.ne.s32.totalorder %s43, %s59
      %p61 = scmp.eq.s32.totalorder %s21, 0
      %p62 = por %p60, %p61
      %s64 = sadd.s32 %s63, 1
      %p67 = scmp.eq.s32.totalorder %s15, 1
      %p68 = scmp.ne.s32.totalorder %s63, %s65
      %p69 = scmp.eq.s32.totalorder %s15, 0
      %p70 = por %p68, %p69
      %p71 = scmp.ne.s32.totalorder %s63, %s65
      %p72 = scmp.eq.s32.totalorder %s20, 1
      %p73 = por %p71, %p72
      %p74 = scmp.ne.s32.totalorder %s65, %s66
      %p75 = scmp.eq.s32.totalorder %s20, 0
      %p76 = por %p74, %p75
      %p77 = scmp.ne.s32.totalorder %s65, %s66
      %p78 = scmp.eq.s32.totalorder %s21, 1
      %p79 = por %p77, %p78
      %p81 = scmp.ne.s32.totalorder %s66, %s80
      %p82 = scmp.eq.s32.totalorder %s21, 0
      %p83 = por %p81, %p82
      %s85 = sadd.s32 %s84, 1
      %p88 = scmp.eq.s32.totalorder %s15, 1
      %p89 = scmp.ne.s32.totalorder %s84, %s86
      %p90 = scmp.eq.s32.totalorder %s15, 0
      %p91 = por %p89, %p90
      %p92 = scmp.ne.s32.totalorder %s84, %s86
      %p93 = scmp.eq.s32.totalorder %s20, 1
      %p94 = por %p92, %p93
      %p95 = scmp.ne.s32.totalorder %s86, %s87
      %p96 = scmp.eq.s32.totalorder %s20, 0
      %p97 = por %p95, %p96
      %p98 = scmp.ne.s32.totalorder %s86, %s87
      %p99 = scmp.eq.s32.totalorder %s21, 1
      %p100 = por %p98, %p99
      %p102 = scmp.ne.s32.totalorder %s87, %s101
      %p103 = scmp.eq.s32.totalorder %s21, 0
      %p104 = por %p102, %p103
      %s105 = ssub.s32 %s22, %s34
      %s106 = ssub.s32 %s23, %s30
      %s107 = sor.u32 %s105, %s106
      %p108 = scmp.eq.s32.totalorder %s107, 0
      %s110 = sadd.s32 %s109, 1
      %s111 = scalar_select %p108, %s109, %s110
      %p114 = pneg %p108
      %p115 = scmp.eq.s32.totalorder %s15, 1
      %p116 = por %p114, %p115
      %p117 = scmp.ne.s32.totalorder %s109, %s112
      %p118 = scmp.eq.s32.totalorder %s15, 0
      %p119 = por %p117, %p118
      %p120 = scmp.ne.s32.totalorder %s109, %s112
      %p121 = scmp.eq.s32.totalorder %s20, 1
      %p122 = por %p120, %p121
      %p123 = scmp.ne.s32.totalorder %s112, %s113
      %p124 = scmp.eq.s32.totalorder %s20, 0
      %p125 = por %p123, %p124
      %p126 = scmp.ne.s32.totalorder %s112, %s113
      %p127 = scmp.eq.s32.totalorder %s21, 1
      %p128 = por %p126, %p127
      %p130 = scmp.ne.s32.totalorder %s113, %s129
      %p131 = scmp.eq.s32.totalorder %s21, 0
      %p132 = por %p130, %p131
      %p133 = scmp.le.s32.totalorder 1, %s15
      %p134 = scmp.lt.s32.totalorder %s15, 3
      %p135 = pnand %p133, %p134
      %p136 = pneg %p135
      // Predicated region
      $region9: #{tpu_custom_call.1} parent=5 // pred_check
        _
      $region10: #{tpu_custom_call.1} parent=5 // pred_check_branch
        %138 = sbr.rel (%p135) target = $region12
      $region11: #{tpu_custom_call.1} parent=5 // pred_region
        %s139 = ssub.s32 %s15, 1
        // Predicated region
        $region13: #{tpu_custom_call.1} parent=11 // pred_check
          %p140 = pneg %p76
        $region14: #{tpu_custom_call.1} parent=11 // pred_check_branch
          %142 = sbr.rel (%p140) target = $region16
        $region15: #{tpu_custom_call.1} parent=11 // pred_region
          _
        $region16: #{tpu_custom_call.1} parent=11 // pred_fallthru
          _
        // Predicated region
        $region17: #{tpu_custom_call.1} parent=11 // pred_check
          %p143 = pneg %p97
        $region18: #{tpu_custom_call.1} parent=11 // pred_check_branch
          %145 = sbr.rel (%p143) target = $region20
        $region19: #{tpu_custom_call.1} parent=11 // pred_region
          _
        $region20: #{tpu_custom_call.1} parent=11 // pred_fallthru
          _
      $region12: #{tpu_custom_call.1} parent=5 // pred_fallthru
        _
      %p146 = scmp.lt.s32.totalorder %s15, 2
      // Predicated region
      $region21: #{tpu_custom_call.1} parent=5 // pred_check
        %p147 = pneg %p146
      $region22: #{tpu_custom_call.1} parent=5 // pred_check_branch
        %149 = sbr.rel (%p147) target = $region24
      $region23: #{tpu_custom_call.1} parent=5 // pred_region
        // Predicated region
        $region25: #{tpu_custom_call.1} parent=23 // pred_check
          %p150 = pneg %p49
        $region26: #{tpu_custom_call.1} parent=23 // pred_check_branch
          %152 = sbr.rel (%p150) target = $region28
        $region27: #{tpu_custom_call.1} parent=23 // pred_region
          %s153 = sand.u32 %s39, 1
          %s154 = scalar_lea.sflag [#allocation3], %s153
          %s155 = sand.u32 %s39, 1
          %s156 = smul.addr %s155, 8
          %s157 = scalar_lea.vmem [#allocation2], %s156
          %s159 = ssub.s32 128, 128
          %160 = vsyncadd %s154, %s159
          %s161 = smul.addr %s22, 2
          %s162 = sadd.s32 %s23, %s161
          %s163 = smul.addr %s162, 128
          %s164 = scalar_lea.hbm %s0, %s163
          %s166 = sshll.u32 %s157, 4
          %s167 = int_to_ptr.vmem [resolvable:$true] %s166
          %169 = dma.hbm_to_vmem [thread:$0]  %s164, 128, %s167, %s154
        $region28: #{tpu_custom_call.1} parent=23 // pred_fallthru
          _
      $region24: #{tpu_custom_call.1} parent=5 // pred_fallthru
        _
      %p170 = scmp.le.s32.totalorder 1, %s15
      %p171 = scmp.lt.s32.totalorder %s15, 3
      %p172 = pnand %p170, %p171
      %p173 = pneg %p172
      // Predicated region
      $region29: #{tpu_custom_call.1} parent=5 // pred_check
        _
      $region30: #{tpu_custom_call.1} parent=5 // pred_check_branch
        %175 = sbr.rel (%p172) target = $region32
      $region31: #{tpu_custom_call.1} parent=5 // pred_region
        %s176 = ssub.s32 %s15, 1
        %s177 = sand.u32 %s42, 1
        %s178 = scalar_lea.sflag [#allocation3], %s177
        %s179 = sand.u32 %s42, 1
        %s180 = smul.addr %s179, 8
        %s181 = scalar_lea.vmem [#allocation2], %s180
        // Predicated region
        $region33: #{tpu_custom_call.1} parent=31 // pred_check
          %p182 = pneg %p55
        $region34: #{tpu_custom_call.1} parent=31 // pred_check_branch
          %184 = sbr.rel (%p182) target = $region36
        $region35: #{tpu_custom_call.1} parent=31 // pred_region
          %185 = dma.done %s178, 128
        $region36: #{tpu_custom_call.1} parent=31 // pred_fallthru
          _
        %s186 = sand.u32 %s42, 1
        %s187 = scalar_lea.sflag [#allocation3], %s186
        %s188 = sand.u32 %s42, 1
        %s189 = smul.addr %s188, 8
        %s190 = scalar_lea.vmem [#allocation2], %s189
        %p191 = pneg %p55
        %p192 = pneg %p52
        %p193 = pneg %p76
        %p194 = pneg %p73
        %p195 = pneg %p97
        %p196 = pneg %p94
        %p197 = pneg %p125
        %p198 = pneg %p122
        %s199 = sand.u32 %s112, 1
        %s200 = scalar_lea.sflag [#allocation4], %s199
        %s201 = sand.u32 %s112, 1
        %s202 = smul.addr %s201, 8
        %s203 = scalar_lea.vmem [#allocation5], %s202
        %v204 = vld [vmem:[%s181] sm:$0xff]
        %v205 = vld [vmem:[%s1] sm:$0xff]
        %v206 = vld [vmem:[%s2] sm:$0xff]
        %208 = vset.pattern.permute.xlu0 0
        %209 = vperm.xlu0 %208, %v206
        %v210 = vpop.permute.xlu0 %209
        %vm212 = vcmask 64512
        %v214 = vsel %vm212, %v205, 0
        %216 = vmatprep.subr.mxu0 0.0
        %217 = vmatpush1.msra.mxu0 0.0
        %218 = vmatprep.subr.mxu0 0.0
        %219 = vmatpush1.msra.mxu0 0.0
        %220 = vmatprep.subr.mxu0 0.0
        %221 = vmatpush1.msra.mxu0 0.0
        %222 = vmatprep.subr.mxu0 0.0
        %223 = vmatpush1.msra.mxu0 0.0
        %224 = vmatprep.subr.mxu0 0.0
        %225 = vmatpush1.msra.mxu0 0.0
        %226 = vmatprep.subr.mxu0 0.0
        %227 = vmatpush1.msra.mxu0 0.0
        %228 = vmatprep.subr.mxu0 0.0
        %229 = vmatpush1.msra.mxu0 0.0
        %230 = vmatprep.subr.mxu0 0.0
        %231 = vmatpush1.msra.mxu0 0.0
        %232 = vmatprep.subr.mxu0 0.0
        %233 = vmatpush1.msra.mxu0 0.0
        %234 = vmatprep.subr.mxu0 0.0
        %235 = vmatpush1.msra.mxu0 0.0
        %236 = vmatprep.subr.mxu0 0.0
        %237 = vmatpush1.msra.mxu0 0.0
        %238 = vmatprep.subr.mxu0 0.0
        %239 = vmatpush1.msra.mxu0 0.0
        %240 = vmatprep.subr.mxu0 0.0
        %241 = vmatpush1.msra.mxu0 0.0
        %242 = vmatprep.subr.mxu0 0.0
        %243 = vmatpush1.msra.mxu0 0.0
        %244 = vmatprep.subr.mxu0 0.0
        %245 = vmatpush1.msra.mxu0 0.0
        %246 = vmatprep.subr.mxu0 0.0
        %v247 = vand.u32 %v204, 4294901760
        %248 = vmatpush1.msra.mxu0 %v247
        %249 = vmatprep.subr.mxu0 0.0
        %250 = vmatpush2.msra.mxu0 0.0
        %251 = vmatprep.subr.mxu0 0.0
        %252 = vmatpush2.msra.mxu0 0.0
        %253 = vmatprep.subr.mxu0 0.0
        %254 = vmatpush2.msra.mxu0 0.0
        %255 = vmatprep.subr.mxu0 0.0
        %256 = vmatpush2.msra.mxu0 0.0
        %257 = vmatprep.subr.mxu0 0.0
        %258 = vmatpush2.msra.mxu0 0.0
        %259 = vmatprep.subr.mxu0 0.0
        %260 = vmatpush2.msra.mxu0 0.0
        %261 = vmatprep.subr.mxu0 0.0
        %262 = vmatpush2.msra.mxu0 0.0
        %263 = vmatprep.subr.mxu0 0.0
        %264 = vmatpush2.msra.mxu0 0.0
        %265 = vmatprep.subr.mxu0 0.0
        %266 = vmatpush2.msra.mxu0 0.0
        %267 = vmatprep.subr.mxu0 0.0
        %268 = vmatpush2.msra.mxu0 0.0
        %269 = vmatprep.subr.mxu0 0.0
        %270 = vmatpush2.msra.mxu0 0.0
        %271 = vmatprep.subr.mxu0 0.0
        %272 = vmatpush2.msra.mxu0 0.0
        %273 = vmatprep.subr.mxu0 0.0
        %274 = vmatpush2.msra.mxu0 0.0
        %275 = vmatprep.subr.mxu0 0.0
        %276 = vmatpush2.msra.mxu0 0.0
        %277 = vmatprep.subr.mxu0 0.0
        %278 = vmatpush2.msra.mxu0 0.0
        %279 = vmatprep.subr.mxu0 0.0
        %280 = vmatpush2.msra.mxu0 0.0
        %281 = vmatprep.mubr.f32.mxu0 0.0
        %v282 = vand.u32 %v214, 4294901760
        %v283 = vsub.f32 %v214, %v282
        %v284 = vand.u32 %v283, 4294901760
        %v285 = vsub.f32 %v283, %v284
        %v286 = vand.u32 %v285, 4294901760
        %287 = vmatmul.mubr.f32.gmra.mxu0 %v286
        %v288 = vpop.f32.mrf.mxu0
        %v289 = vadd.f32 %v210, %v288
        %v290 = vpop.f32.mrf.mxu0
        %291 = vdwg.mxu0
        %292 = vmatprep.subr.mxu0 0.0
        %293 = vmatpush1.msra.mxu0 0.0
        %294 = vmatprep.subr.mxu0 0.0
        %295 = vmatpush1.msra.mxu0 0.0
        %296 = vmatprep.subr.mxu0 0.0
        %297 = vmatpush1.msra.mxu0 0.0
        %298 = vmatprep.subr.mxu0 0.0
        %299 = vmatpush1.msra.mxu0 0.0
        %300 = vmatprep.subr.mxu0 0.0
        %301 = vmatpush1.msra.mxu0 0.0
        %302 = vmatprep.subr.mxu0 0.0
        %303 = vmatpush1.msra.mxu0 0.0
        %304 = vmatprep.subr.mxu0 0.0
        %305 = vmatpush1.msra.mxu0 0.0
        %306 = vmatprep.subr.mxu0 0.0
        %307 = vmatpush1.msra.mxu0 0.0
        %308 = vmatprep.subr.mxu0 0.0
        %309 = vmatpush1.msra.mxu0 0.0
        %310 = vmatprep.subr.mxu0 0.0
        %311 = vmatpush1.msra.mxu0 0.0
        %312 = vmatprep.subr.mxu0 0.0
        %313 = vmatpush1.msra.mxu0 0.0
        %314 = vmatprep.subr.mxu0 0.0
        %315 = vmatpush1.msra.mxu0 0.0
        %316 = vmatprep.subr.mxu0 0.0
        %317 = vmatpush1.msra.mxu0 0.0
        %318 = vmatprep.subr.mxu0 0.0
        %319 = vmatpush1.msra.mxu0 0.0
        %320 = vmatprep.subr.mxu0 0.0
        %321 = vmatpush1.msra.mxu0 0.0
        %322 = vmatprep.subr.mxu0 0.0
        %v323 = vand.u32 %v204, 4294901760
        %v324 = vsub.f32 %v204, %v323
        %v325 = vand.u32 %v324, 4294901760
        %v326 = vsub.f32 %v324, %v325
        %v327 = vand.u32 %v326, 4294901760
        %328 = vmatpush1.msra.mxu0 %v327
        %329 = vmatprep.subr.mxu0 0.0
        %330 = vmatpush2.msra.mxu0 0.0
        %331 = vmatprep.subr.mxu0 0.0
        %332 = vmatpush2.msra.mxu0 0.0
        %333 = vmatprep.subr.mxu0 0.0
        %334 = vmatpush2.msra.mxu0 0.0
        %335 = vmatprep.subr.mxu0 0.0
        %336 = vmatpush2.msra.mxu0 0.0
        %337 = vmatprep.subr.mxu0 0.0
        %338 = vmatpush2.msra.mxu0 0.0
        %339 = vmatprep.subr.mxu0 0.0
        %340 = vmatpush2.msra.mxu0 0.0
        %341 = vmatprep.subr.mxu0 0.0
        %342 = vmatpush2.msra.mxu0 0.0
        %343 = vmatprep.subr.mxu0 0.0
        %344 = vmatpush2.msra.mxu0 0.0
        %345 = vmatprep.subr.mxu0 0.0
        %346 = vmatpush2.msra.mxu0 0.0
        %347 = vmatprep.subr.mxu0 0.0
        %348 = vmatpush2.msra.mxu0 0.0
        %349 = vmatprep.subr.mxu0 0.0
        %350 = vmatpush2.msra.mxu0 0.0
        %351 = vmatprep.subr.mxu0 0.0
        %352 = vmatpush2.msra.mxu0 0.0
        %353 = vmatprep.subr.mxu0 0.0
        %354 = vmatpush2.msra.mxu0 0.0
        %355 = vmatprep.subr.mxu0 0.0
        %356 = vmatpush2.msra.mxu0 0.0
        %357 = vmatprep.subr.mxu0 0.0
        %358 = vmatpush2.msra.mxu0 0.0
        %359 = vmatprep.subr.mxu0 0.0
        %360 = vmatpush2.msra.mxu0 0.0
        %361 = vmatprep.mubr.f32.mxu0 0.0
        %v362 = vand.u32 %v214, 4294901760
        %363 = vmatmul.mubr.f32.gmra.mxu0 %v362
        %v364 = vpop.f32.mrf.mxu0
        %v365 = vadd.f32 %v289, %v364
        %v366 = vpop.f32.mrf.mxu0
        %367 = vdwg.mxu0
        %368 = vmatprep.subr.mxu0 0.0
        %369 = vmatpush1.msra.mxu0 0.0
        %370 = vmatprep.subr.mxu0 0.0
        %371 = vmatpush1.msra.mxu0 0.0
        %372 = vmatprep.subr.mxu0 0.0
        %373 = vmatpush1.msra.mxu0 0.0
        %374 = vmatprep.subr.mxu0 0.0
        %375 = vmatpush1.msra.mxu0 0.0
        %376 = vmatprep.subr.mxu0 0.0
        %377 = vmatpush1.msra.mxu0 0.0
        %378 = vmatprep.subr.mxu0 0.0
        %379 = vmatpush1.msra.mxu0 0.0
        %380 = vmatprep.subr.mxu0 0.0
        %381 = vmatpush1.msra.mxu0 0.0
        %382 = vmatprep.subr.mxu0 0.0
        %383 = vmatpush1.msra.mxu0 0.0
        %384 = vmatprep.subr.mxu0 0.0
        %385 = vmatpush1.msra.mxu0 0.0
        %386 = vmatprep.subr.mxu0 0.0
        %387 = vmatpush1.msra.mxu0 0.0
        %388 = vmatprep.subr.mxu0 0.0
        %389 = vmatpush1.msra.mxu0 0.0
        %390 = vmatprep.subr.mxu0 0.0
        %391 = vmatpush1.msra.mxu0 0.0
        %392 = vmatprep.subr.mxu0 0.0
        %393 = vmatpush1.msra.mxu0 0.0
        %394 = vmatprep.subr.mxu0 0.0
        %395 = vmatpush1.msra.mxu0 0.0
        %396 = vmatprep.subr.mxu0 0.0
        %397 = vmatpush1.msra.mxu0 0.0
        %398 = vmatprep.subr.mxu0 0.0
        %v399 = vand.u32 %v204, 4294901760
        %v400 = vsub.f32 %v204, %v399
        %401 = vmatpush1.msra.mxu0 %v400
        %402 = vmatprep.subr.mxu0 0.0
        %403 = vmatpush2.msra.mxu0 0.0
        %404 = vmatprep.subr.mxu0 0.0
        %405 = vmatpush2.msra.mxu0 0.0
        %406 = vmatprep.subr.mxu0 0.0
        %407 = vmatpush2.msra.mxu0 0.0
        %408 = vmatprep.subr.mxu0 0.0
        %409 = vmatpush2.msra.mxu0 0.0
        %410 = vmatprep.subr.mxu0 0.0
        %411 = vmatpush2.msra.mxu0 0.0
        %412 = vmatprep.subr.mxu0 0.0
        %413 = vmatpush2.msra.mxu0 0.0
        %414 = vmatprep.subr.mxu0 0.0
        %415 = vmatpush2.msra.mxu0 0.0
        %416 = vmatprep.subr.mxu0 0.0
        %417 = vmatpush2.msra.mxu0 0.0
        %418 = vmatprep.subr.mxu0 0.0
        %419 = vmatpush2.msra.mxu0 0.0
        %420 = vmatprep.subr.mxu0 0.0
        %421 = vmatpush2.msra.mxu0 0.0
        %422 = vmatprep.subr.mxu0 0.0
        %423 = vmatpush2.msra.mxu0 0.0
        %424 = vmatprep.subr.mxu0 0.0
        %425 = vmatpush2.msra.mxu0 0.0
        %426 = vmatprep.subr.mxu0 0.0
        %427 = vmatpush2.msra.mxu0 0.0
        %428 = vmatprep.subr.mxu0 0.0
        %429 = vmatpush2.msra.mxu0 0.0
        %430 = vmatprep.subr.mxu0 0.0
        %431 = vmatpush2.msra.mxu0 0.0
        %432 = vmatprep.subr.mxu0 0.0
        %433 = vmatpush2.msra.mxu0 0.0
        %434 = vmatprep.mubr.f32.mxu0 0.0
        %v435 = vand.u32 %v214, 4294901760
        %v436 = vsub.f32 %v214, %v435
        %437 = vmatmul.mubr.f32.gmra.mxu0 %v436
        %v438 = vpop.f32.mrf.mxu0
        %v439 = vadd.f32 %v365, %v438
        %v440 = vpop.f32.mrf.mxu0
        %441 = vdwg.mxu0
        %442 = vmatprep.subr.mxu0 0.0
        %443 = vmatpush1.msra.mxu0 0.0
        %444 = vmatprep.subr.mxu0 0.0
        %445 = vmatpush1.msra.mxu0 0.0
        %446 = vmatprep.subr.mxu0 0.0
        %447 = vmatpush1.msra.mxu0 0.0
        %448 = vmatprep.subr.mxu0 0.0
        %449 = vmatpush1.msra.mxu0 0.0
        %450 = vmatprep.subr.mxu0 0.0
        %451 = vmatpush1.msra.mxu0 0.0
        %452 = vmatprep.subr.mxu0 0.0
        %453 = vmatpush1.msra.mxu0 0.0
        %454 = vmatprep.subr.mxu0 0.0
        %455 = vmatpush1.msra.mxu0 0.0
        %456 = vmatprep.subr.mxu0 0.0
        %457 = vmatpush1.msra.mxu0 0.0
        %458 = vmatprep.subr.mxu0 0.0
        %459 = vmatpush1.msra.mxu0 0.0
        %460 = vmatprep.subr.mxu0 0.0
        %461 = vmatpush1.msra.mxu0 0.0
        %462 = vmatprep.subr.mxu0 0.0
        %463 = vmatpush1.msra.mxu0 0.0
        %464 = vmatprep.subr.mxu0 0.0
        %465 = vmatpush1.msra.mxu0 0.0
        %466 = vmatprep.subr.mxu0 0.0
        %467 = vmatpush1.msra.mxu0 0.0
        %468 = vmatprep.subr.mxu0 0.0
        %469 = vmatpush1.msra.mxu0 0.0
        %470 = vmatprep.subr.mxu0 0.0
        %471 = vmatpush1.msra.mxu0 0.0
        %472 = vmatprep.subr.mxu0 0.0
        %v473 = vand.u32 %v204, 4294901760
        %474 = vmatpush1.msra.mxu0 %v473
        %475 = vmatprep.subr.mxu0 0.0
        %476 = vmatpush2.msra.mxu0 0.0
        %477 = vmatprep.subr.mxu0 0.0
        %478 = vmatpush2.msra.mxu0 0.0
        %479 = vmatprep.subr.mxu0 0.0
        %480 = vmatpush2.msra.mxu0 0.0
        %481 = vmatprep.subr.mxu0 0.0
        %482 = vmatpush2.msra.mxu0 0.0
        %483 = vmatprep.subr.mxu0 0.0
        %484 = vmatpush2.msra.mxu0 0.0
        %485 = vmatprep.subr.mxu0 0.0
        %486 = vmatpush2.msra.mxu0 0.0
        %487 = vmatprep.subr.mxu0 0.0
        %488 = vmatpush2.msra.mxu0 0.0
        %489 = vmatprep.subr.mxu0 0.0
        %490 = vmatpush2.msra.mxu0 0.0
        %491 = vmatprep.subr.mxu0 0.0
        %492 = vmatpush2.msra.mxu0 0.0
        %493 = vmatprep.subr.mxu0 0.0
        %494 = vmatpush2.msra.mxu0 0.0
        %495 = vmatprep.subr.mxu0 0.0
        %496 = vmatpush2.msra.mxu0 0.0
        %497 = vmatprep.subr.mxu0 0.0
        %498 = vmatpush2.msra.mxu0 0.0
        %499 = vmatprep.subr.mxu0 0.0
        %500 = vmatpush2.msra.mxu0 0.0
        %501 = vmatprep.subr.mxu0 0.0
        %502 = vmatpush2.msra.mxu0 0.0
        %503 = vmatprep.subr.mxu0 0.0
        %504 = vmatpush2.msra.mxu0 0.0
        %505 = vmatprep.subr.mxu0 0.0
        %506 = vmatpush2.msra.mxu0 0.0
        %507 = vmatprep.mubr.f32.mxu0 0.0
        %v508 = vand.u32 %v214, 4294901760
        %v509 = vsub.f32 %v214, %v508
        %v510 = vand.u32 %v509, 4294901760
        %511 = vmatmul.mubr.f32.gmra.mxu0 %v510
        %v512 = vpop.f32.mrf.mxu0
        %v513 = vadd.f32 %v439, %v512
        %v514 = vpop.f32.mrf.mxu0
        %515 = vdwg.mxu0
        %516 = vmatprep.subr.mxu0 0.0
        %517 = vmatpush1.msra.mxu0 0.0
        %518 = vmatprep.subr.mxu0 0.0
        %519 = vmatpush1.msra.mxu0 0.0
        %520 = vmatprep.subr.mxu0 0.0
        %521 = vmatpush1.msra.mxu0 0.0
        %522 = vmatprep.subr.mxu0 0.0
        %523 = vmatpush1.msra.mxu0 0.0
        %524 = vmatprep.subr.mxu0 0.0
        %525 = vmatpush1.msra.mxu0 0.0
        %526 = vmatprep.subr.mxu0 0.0
        %527 = vmatpush1.msra.mxu0 0.0
        %528 = vmatprep.subr.mxu0 0.0
        %529 = vmatpush1.msra.mxu0 0.0
        %530 = vmatprep.subr.mxu0 0.0
        %531 = vmatpush1.msra.mxu0 0.0
        %532 = vmatprep.subr.mxu0 0.0
        %533 = vmatpush1.msra.mxu0 0.0
        %534 = vmatprep.subr.mxu0 0.0
        %535 = vmatpush1.msra.mxu0 0.0
        %536 = vmatprep.subr.mxu0 0.0
        %537 = vmatpush1.msra.mxu0 0.0
        %538 = vmatprep.subr.mxu0 0.0
        %539 = vmatpush1.msra.mxu0 0.0
        %540 = vmatprep.subr.mxu0 0.0
        %541 = vmatpush1.msra.mxu0 0.0
        %542 = vmatprep.subr.mxu0 0.0
        %543 = vmatpush1.msra.mxu0 0.0
        %544 = vmatprep.subr.mxu0 0.0
        %545 = vmatpush1.msra.mxu0 0.0
        %546 = vmatprep.subr.mxu0 0.0
        %v547 = vand.u32 %v204, 4294901760
        %v548 = vsub.f32 %v204, %v547
        %v549 = vand.u32 %v548, 4294901760
        %550 = vmatpush1.msra.mxu0 %v549
        %551 = vmatprep.subr.mxu0 0.0
        %552 = vmatpush2.msra.mxu0 0.0
        %553 = vmatprep.subr.mxu0 0.0
        %554 = vmatpush2.msra.mxu0 0.0
        %555 = vmatprep.subr.mxu0 0.0
        %556 = vmatpush2.msra.mxu0 0.0
        %557 = vmatprep.subr.mxu0 0.0
        %558 = vmatpush2.msra.mxu0 0.0
        %559 = vmatprep.subr.mxu0 0.0
        %560 = vmatpush2.msra.mxu0 0.0
        %561 = vmatprep.subr.mxu0 0.0
        %562 = vmatpush2.msra.mxu0 0.0
        %563 = vmatprep.subr.mxu0 0.0
        %564 = vmatpush2.msra.mxu0 0.0
        %565 = vmatprep.subr.mxu0 0.0
        %566 = vmatpush2.msra.mxu0 0.0
        %567 = vmatprep.subr.mxu0 0.0
        %568 = vmatpush2.msra.mxu0 0.0
        %569 = vmatprep.subr.mxu0 0.0
        %570 = vmatpush2.msra.mxu0 0.0
        %571 = vmatprep.subr.mxu0 0.0
        %572 = vmatpush2.msra.mxu0 0.0
        %573 = vmatprep.subr.mxu0 0.0
        %574 = vmatpush2.msra.mxu0 0.0
        %575 = vmatprep.subr.mxu0 0.0
        %576 = vmatpush2.msra.mxu0 0.0
        %577 = vmatprep.subr.mxu0 0.0
        %578 = vmatpush2.msra.mxu0 0.0
        %579 = vmatprep.subr.mxu0 0.0
        %580 = vmatpush2.msra.mxu0 0.0
        %581 = vmatprep.subr.mxu0 0.0
        %582 = vmatpush2.msra.mxu0 0.0
        %583 = vmatprep.mubr.f32.mxu0 0.0
        %v584 = vand.u32 %v214, 4294901760
        %585 = vmatmul.mubr.f32.gmra.mxu0 %v584
        %v586 = vpop.f32.mrf.mxu0
        %v587 = vadd.f32 %v513, %v586
        %v588 = vpop.f32.mrf.mxu0
        %589 = vdwg.mxu0
        %590 = vmatprep.subr.mxu0 0.0
        %591 = vmatpush1.msra.mxu0 0.0
        %592 = vmatprep.subr.mxu0 0.0
        %593 = vmatpush1.msra.mxu0 0.0
        %594 = vmatprep.subr.mxu0 0.0
        %595 = vmatpush1.msra.mxu0 0.0
        %596 = vmatprep.subr.mxu0 0.0
        %597 = vmatpush1.msra.mxu0 0.0
        %598 = vmatprep.subr.mxu0 0.0
        %599 = vmatpush1.msra.mxu0 0.0
        %600 = vmatprep.subr.mxu0 0.0
        %601 = vmatpush1.msra.mxu0 0.0
        %602 = vmatprep.subr.mxu0 0.0
        %603 = vmatpush1.msra.mxu0 0.0
        %604 = vmatprep.subr.mxu0 0.0
        %605 = vmatpush1.msra.mxu0 0.0
        %606 = vmatprep.subr.mxu0 0.0
        %607 = vmatpush1.msra.mxu0 0.0
        %608 = vmatprep.subr.mxu0 0.0
        %609 = vmatpush1.msra.mxu0 0.0
        %610 = vmatprep.subr.mxu0 0.0
        %611 = vmatpush1.msra.mxu0 0.0
        %612 = vmatprep.subr.mxu0 0.0
        %613 = vmatpush1.msra.mxu0 0.0
        %614 = vmatprep.subr.mxu0 0.0
        %615 = vmatpush1.msra.mxu0 0.0
        %616 = vmatprep.subr.mxu0 0.0
        %617 = vmatpush1.msra.mxu0 0.0
        %618 = vmatprep.subr.mxu0 0.0
        %619 = vmatpush1.msra.mxu0 0.0
        %620 = vmatprep.subr.mxu0 0.0
        %v621 = vand.u32 %v204, 4294901760
        %622 = vmatpush1.msra.mxu0 %v621
        %623 = vmatprep.subr.mxu0 0.0
        %624 = vmatpush2.msra.mxu0 0.0
        %625 = vmatprep.subr.mxu0 0.0
        %626 = vmatpush2.msra.mxu0 0.0
        %627 = vmatprep.subr.mxu0 0.0
        %628 = vmatpush2.msra.mxu0 0.0
        %629 = vmatprep.subr.mxu0 0.0
        %630 = vmatpush2.msra.mxu0 0.0
        %631 = vmatprep.subr.mxu0 0.0
        %632 = vmatpush2.msra.mxu0 0.0
        %633 = vmatprep.subr.mxu0 0.0
        %634 = vmatpush2.msra.mxu0 0.0
        %635 = vmatprep.subr.mxu0 0.0
        %636 = vmatpush2.msra.mxu0 0.0
        %637 = vmatprep.subr.mxu0 0.0
        %638 = vmatpush2.msra.mxu0 0.0
        %639 = vmatprep.subr.mxu0 0.0
        %640 = vmatpush2.msra.mxu0 0.0
        %641 = vmatprep.subr.mxu0 0.0
        %642 = vmatpush2.msra.mxu0 0.0
        %643 = vmatprep.subr.mxu0 0.0
        %644 = vmatpush2.msra.mxu0 0.0
        %645 = vmatprep.subr.mxu0 0.0
        %646 = vmatpush2.msra.mxu0 0.0
        %647 = vmatprep.subr.mxu0 0.0
        %648 = vmatpush2.msra.mxu0 0.0
        %649 = vmatprep.subr.mxu0 0.0
        %650 = vmatpush2.msra.mxu0 0.0
        %651 = vmatprep.subr.mxu0 0.0
        %652 = vmatpush2.msra.mxu0 0.0
        %653 = vmatprep.subr.mxu0 0.0
        %654 = vmatpush2.msra.mxu0 0.0
        %655 = vmatprep.mubr.f32.mxu0 0.0
        %v656 = vand.u32 %v214, 4294901760
        %657 = vmatmul.mubr.f32.gmra.mxu0 %v656
        %v658 = vpop.f32.mrf.mxu0
        %v659 = vadd.f32 %v587, %v658
        %v660 = vpop.f32.mrf.mxu0
        %661 = vdwg.mxu0
        %v662 = vsub.f32 0.0, %v659
        %v663 = vmul.f32 %v662, 1.442695
        %v664 = vpow.pop %v663
        %v665 = vadd.f32 %v664, 1.0
        %v666 = vrcp.pop %v665
        %v667 = vmul.f32 %v666, %v204
        %668 = vst [vmem:[%s203] sm:$0xff] %v667
        %s669 = sand.u32 %s112, 1
        %s670 = scalar_lea.sflag [#allocation4], %s669
        %s671 = sand.u32 %s112, 1
        %s672 = smul.addr %s671, 8
        %s673 = scalar_lea.vmem [#allocation5], %s672
        // Predicated region
        $region37: #{tpu_custom_call.1} parent=31 // pred_check
          %p674 = pneg %p122
        $region38: #{tpu_custom_call.1} parent=31 // pred_check_branch
          %676 = sbr.rel (%p674) target = $region40
        $region39: #{tpu_custom_call.1} parent=31 // pred_region
          %s678 = ssub.s32 128, 128
          %679 = vsyncadd %s670, %s678
          %s680 = smul.addr %s24, 2
          %s681 = sadd.s32 %s25, %s680
          %s682 = smul.addr %s681, 128
          %s683 = scalar_lea.hbm %s3, %s682
          %s685 = sshll.u32 %s673, 4
          %s686 = int_to_ptr.vmem [resolvable:$true] %s685
          %688 = dma.vmem_to_hbm [thread:$0]  %s686, 128, %s683, %s670
        $region40: #{tpu_custom_call.1} parent=31 // pred_fallthru
          _
      $region32: #{tpu_custom_call.1} parent=5 // pred_fallthru
        _
      %p689 = scmp.le.s32.totalorder 2, %s15
      // Predicated region
      $region41: #{tpu_custom_call.1} parent=5 // pred_check
        %p690 = pneg %p689
      $region42: #{tpu_custom_call.1} parent=5 // pred_check_branch
        %692 = sbr.rel (%p690) target = $region44
      $region43: #{tpu_custom_call.1} parent=5 // pred_region
        %s693 = ssub.s32 %s15, 2
        // Predicated region
        $region45: #{tpu_custom_call.1} parent=43 // pred_check
          %p694 = pneg %p128
        $region46: #{tpu_custom_call.1} parent=43 // pred_check_branch
          %696 = sbr.rel (%p694) target = $region48
        $region47: #{tpu_custom_call.1} parent=43 // pred_region
          %s697 = sand.u32 %s113, 1
          %s698 = scalar_lea.sflag [#allocation4], %s697
          %s699 = sand.u32 %s113, 1
          %s700 = smul.addr %s699, 8
          %s701 = scalar_lea.vmem [#allocation5], %s700
          %702 = dma.done %s698, 128
        $region48: #{tpu_custom_call.1} parent=43 // pred_fallthru
          _
      $region44: #{tpu_custom_call.1} parent=5 // pred_fallthru
        _
    $region6: #{tpu_custom_call.1} parent=1 // loop_footer
      %s19 = sadd.s32 1, %s15
    $region7: #{tpu_custom_call.1} parent=1 // loop_footer_branch
      %14 = sbr.rel target = $region3
    $region8: #{tpu_custom_call.1} parent=1 // loop_exit
      _
    %703 = vsyncpa [#allocation3], 1
    %s704 = scalar_lea.sflag [#allocation3], 1
    %705 = vsyncpa %s704, 1
    %706 = vsyncpa [#allocation4], 1
    %s707 = scalar_lea.sflag [#allocation4], 1
    %708 = vsyncpa %s707, 1

</llo_original>
